<compile_context>
chip_gen: v6e
topology: v6e:2x2x1
jax: 0.10.0
libtpu: 0.0.40
codegen_flags: <defaults>
</compile_context>

<pallas_src>
from typing import NamedTuple

import jax
import jax.numpy as jnp
from jax import lax
from jax.experimental import pallas as pl
from jax.experimental.pallas import tpu as pltpu


_PLAN_FRACTION = 0.85  # leave headroom for compiler-internal scratch


def _round_up(x, m):
    return ((x + m - 1) // m) * m


def _cdiv(a, b):
    return -(-a // b)


def _vmem_budget_bytes():
    """Generation-aware VMEM budget: ~half of physical VMEM, clamped to [32, 64] MiB.
    v5e/v6e (128 MiB physical) -> 64 MiB; v7x (64 MiB per core) -> 32 MiB."""
    cap = 128 * 1024 * 1024
    try:
        info = pltpu.get_tpu_info()
        cap = int(getattr(info, "vmem_capacity_bytes", cap))
    except Exception:
        pass
    return max(min(cap // 2, 64 * 1024 * 1024), 32 * 1024 * 1024)


class FlattenHeadParams(NamedTuple):
    w_kmajor: jax.Array   # [nf_padded, n_pad], compute dtype, K-major, zero-padded
    bias2d: jax.Array     # [1, n_pad], float32
    nf: int               # true contraction length (= d_model * patch_num)
    n_out: int            # true target_window
    n_pad: int            # lane-padded width used for weight / accumulator
    tk: int               # K (contraction) tile size
    vmem_budget: int      # planning budget == vmem_limit_bytes passed to Mosaic


def prepare_flatten_head_params(weight, bias, *, compute_dtype=None, force_tk=None,
                                vmem_budget=None):
    """One-time (per-parameter-load) prep; nothing here is re-done per forward call."""
    n_out, nf = weight.shape
    assert bias.shape == (n_out,)
    compute_dtype = jnp.dtype(compute_dtype if compute_dtype is not None else weight.dtype)
    itemsize = compute_dtype.itemsize
    budget = int(vmem_budget) if vmem_budget is not None else _vmem_budget_bytes()
    plan_budget = int(budget * _PLAN_FRACTION)

    n_pad = _round_up(n_out, 128)  # lane-dense weight / accumulator width

    # --- choose the K (contraction) tile -------------------------------------------------
    # Keep the (double-buffered) weight block within ~40% of the budget; small weights stay
    # fully resident (single K step).
    if force_tk is not None:
        tk = int(force_tk)
    else:
        w_budget = plan_budget * 2 // 5
        if 2 * nf * n_pad * itemsize <= w_budget or nf <= 128:
            tk = nf
        else:
            tk = (w_budget // (2 * n_pad * itemsize)) // 128 * 128
            tk = max(128, int(tk))
    if tk >= nf:
        tk = nf
    grid_k = _cdiv(nf, tk)
    nf_padded = grid_k * tk

    # --- prepare weight/bias (transpose once to K-major, pad, cast) ----------------------
    w_kmajor = weight.astype(compute_dtype).T                      # [nf, n_out]
    w_kmajor = jnp.pad(w_kmajor, ((0, nf_padded - nf), (0, n_pad - n_out)))
    bias2d = jnp.pad(bias.astype(jnp.float32), (0, n_pad - n_out)).reshape(1, n_pad)
    return FlattenHeadParams(w_kmajor, bias2d, nf, n_out, n_pad, tk, budget)


def _choose_tm(M, tk, n_pad, n_out, x_itemsize, out_itemsize, plan_budget, min_rows):
    """Largest M tile that fits the budget (conservatively counting 2 pipeline buffers
    for every operand), capped at 2048 rows and at >= 2 grid steps when possible."""
    fixed = 2 * tk * n_pad * x_itemsize + 2 * n_pad * 4                     # weight + bias
    per_row = 2 * tk * x_itemsize + 2 * n_out * out_itemsize + n_pad * 4    # x + out + acc
    avail = max(plan_budget - fixed, 1 << 20)
    tm = int(avail // per_row)
    tm = max(min_rows, min(2048, tm))
    tm = (tm // min_rows) * min_rows
    tm = min(tm, _round_up(M, min_rows))
    # Keep >= 2 steps along M so v7x's two TensorCores both get work (free on v5e/v6e).
    if M >= 2 * min_rows:
        tm = min(tm, _round_up(_cdiv(M, 2), min_rows))
    return max(tm, min_rows)


def _make_kernel(nf, tk, n_out, n_pad, mask_tail):
    def kernel(x_ref, w_ref, b_ref, o_ref, acc_ref):
        k = pl.program_id(1)

        @pl.when(k == 0)
        def _init():
            acc_ref[...] = jnp.zeros_like(acc_ref)

        x = x_ref[...]
        if mask_tail:
            # Last K tile reads past nf (unspecified values); zero those columns.
            col = k * tk + lax.broadcasted_iota(jnp.int32, x.shape, 1)
            x = jnp.where(col < nf, x, jnp.zeros_like(x))
        acc_ref[...] += jnp.dot(x, w_ref[...], preferred_element_type=jnp.float32)

        @pl.when(k == pl.num_programs(1) - 1)
        def _finalize():
            acc = acc_ref[...]
            b = b_ref[...]
            if n_out != n_pad:
                acc = acc[:, :n_out]
                b = b[:, :n_out]
            o_ref[...] = (acc + b).astype(o_ref.dtype)

    return kernel


def flatten_head_forward(x, params: FlattenHeadParams):
    """x: [bs, n_vars, d_model, patch_num] -> [bs, n_vars, target_window]."""
    bs, n_vars, d_model, patch_num = x.shape
    nf = d_model * patch_num
    assert nf == params.nf, "input feature size does not match prepared parameters"

    compute_dtype = params.w_kmajor.dtype
    out_dtype = x.dtype
    M = bs * n_vars
    x_flat = x.reshape(M, nf)                       # nn.Flatten(start_dim=-2), row-major
    if x_flat.dtype != compute_dtype:
        # Only worth it when upstream already produces compute_dtype; kept for completeness.
        x_flat = x_flat.astype(compute_dtype)

    tk, n_pad, n_out = params.tk, params.n_pad, params.n_out
    grid_k = params.w_kmajor.shape[0] // tk
    mask_tail = (grid_k * tk != nf)

    min_rows = max(8, 32 // jnp.dtype(compute_dtype).itemsize)   # 8 for f32, 16 for bf16
    plan_budget = int(params.vmem_budget * _PLAN_FRACTION)
    tm = _choose_tm(M, tk, n_pad, n_out,
                    jnp.dtype(compute_dtype).itemsize,
                    jnp.dtype(out_dtype).itemsize,
                    plan_budget, min_rows)
    grid = (_cdiv(M, tm), grid_k)

    out = pl.pallas_call(
        _make_kernel(nf, tk, n_out, n_pad, mask_tail),
        out_shape=jax.ShapeDtypeStruct((M, n_out), out_dtype),
        grid_spec=pltpu.PrefetchScalarGridSpec(
            num_scalar_prefetch=0,
            grid=grid,
            in_specs=[
                pl.BlockSpec((tm, tk), lambda i, k: (i, k)),      # streamed x tiles
                pl.BlockSpec((tk, n_pad), lambda i, k: (k, 0)),   # K-major weight tiles
                pl.BlockSpec((1, n_pad), lambda i, k: (0, 0)),    # bias, resident
            ],
            out_specs=pl.BlockSpec((tm, n_out), lambda i, k: (i, 0)),
            scratch_shapes=[pltpu.VMEM((tm, n_pad), jnp.float32)],  # f32 accumulator
        ),
        compiler_params=pltpu.CompilerParams(
            dimension_semantics=("parallel", "arbitrary"),
            vmem_limit_bytes=int(params.vmem_budget),
        ),
    )(x_flat, params.w_kmajor, params.bias2d)

    # TODO(synk): dropout(head_dropout=0) is identity at inference; no RNG path needed.
    return out.reshape(bs, n_vars, n_out)


if __name__ == "__main__":
    key = jax.random.PRNGKey(0)
    kx, kw, kb, kx2 = jax.random.split(key, 4)

    # --- Test 1: module-consistent small shapes, f32 end-to-end ---------------------------
    bs, n_vars, d_model, patch_num = 2, 4, 16, 16
    nf = d_model * patch_num                 # 256
    target_window = 96                       # not a multiple of 128 -> direct unpadded store

    x = jax.random.normal(kx, (bs, n_vars, d_model, patch_num), dtype=jnp.float32)
    bound = 1.0 / (nf ** 0.5)
    weight = jax.random.uniform(kw, (target_window, nf), minval=-bound, maxval=bound,
                                dtype=jnp.float32)
    bias = jax.random.uniform(kb, (target_window,), minval=-bound, maxval=bound,
                              dtype=jnp.float32)

    params = prepare_flatten_head_params(weight, bias)        # one-time parameter prep
    y = flatten_head_forward(x, params)
    jax.block_until_ready(y)

    ref = x.reshape(bs, n_vars, nf) @ weight.T + bias
    assert y.shape == (bs, n_vars, target_window)
    assert jnp.allclose(y, ref, atol=1e-5, rtol=1e-5)

    # --- Test 2: bf16 streaming path (halves the dominant HBM streams) --------------------
    params_bf16 = prepare_flatten_head_params(weight, bias, compute_dtype=jnp.bfloat16)
    y_bf16 = flatten_head_forward(x.astype(jnp.bfloat16), params_bf16)
    jax.block_until_ready(y_bf16)
    assert jnp.allclose(y_bf16.astype(jnp.float32), ref, atol=5e-2, rtol=5e-2)

    # --- Test 3: forced K-split + contraction-tail masking (large-nf / v7x path) ----------
    d2, p2 = 20, 20                                            # nf = 400 (not a 128 multiple)
    x2 = jax.random.normal(kx2, (bs, n_vars, d2, p2), dtype=jnp.float32)
    w2 = jax.random.uniform(kw, (target_window, d2 * p2), minval=-bound, maxval=bound,
                            dtype=jnp.float32)
    params2 = prepare_flatten_head_params(w2, bias, force_tk=256)   # grid_k=2, masked tail
    y2 = flatten_head_forward(x2, params2)
    jax.block_until_ready(y2)
    ref2 = x2.reshape(bs, n_vars, d2 * p2) @ w2.T + bias
    assert jnp.allclose(y2, ref2, atol=1e-4, rtol=1e-4)

    print("KERNEL_OK")
</pallas_src>

<mosaic_0001>
module attributes {stable_mosaic.version = 11 : i64} {
  func.func @kernel(%arg0: i32, %arg1: i32, %arg2: memref<8x256xf32, #tpu.memory_space<vmem>>, %arg3: memref<256x128xf32, #tpu.memory_space<vmem>>, %arg4: memref<1x128xf32, #tpu.memory_space<vmem>>, %arg5: memref<8x96xf32, #tpu.memory_space<vmem>>, %arg6: memref<8x128xf32, #tpu.memory_space<vmem>>) attributes {dimension_semantics = [#tpu.dimension_semantics<parallel>, #tpu.dimension_semantics<arbitrary>], iteration_bounds = array<i64: 1, 1>, scalar_prefetch = 0 : i64, scratch_operands = 1 : i64, tpu.core_type = #tpu.core_type<tc>, window_params = [{transform_indices = @transform_0, window_bounds = array<i64: 8, 256>}, {transform_indices = @transform_1, window_bounds = array<i64: 256, 128>}, {pipeline_mode = #tpu.pipeline_mode<synchronous>, transform_indices = @transform_2, window_bounds = array<i64: 1, 128>}, {transform_indices = @transform_3, window_bounds = array<i64: 8, 96>}]} {
    %c0_i32 = arith.constant 0 : i32
    %0 = arith.cmpi eq, %arg1, %c0_i32 : i32
    %1 = arith.extui %0 : i1 to i32
    %c0_i32_0 = arith.constant 0 : i32
    %2 = arith.cmpi ne, %1, %c0_i32_0 : i32
    scf.if %2 {
      %cst_10 = arith.constant 0.000000e+00 : f32
      %12 = vector.broadcast %cst_10 : f32 to vector<8x128xf32>
      %c0_11 = arith.constant 0 : index
      %c0_12 = arith.constant 0 : index
      %13 = vector.load %arg6[%c0_11, %c0_12] : memref<8x128xf32, #tpu.memory_space<vmem>>, vector<8x128xf32>
      tpu.vector_store %arg6[%c0_11, %c0_12], %12 {strides = array<i32>} : memref<8x128xf32, #tpu.memory_space<vmem>>, vector<8x128xf32>,
    } else {
    }
    %c0 = arith.constant 0 : index
    %c0_1 = arith.constant 0 : index
    %3 = vector.load %arg2[%c0, %c0_1] : memref<8x256xf32, #tpu.memory_space<vmem>>, vector<8x256xf32>
    %c0_2 = arith.constant 0 : index
    %c0_3 = arith.constant 0 : index
    %4 = vector.load %arg6[%c0_2, %c0_3] : memref<8x128xf32, #tpu.memory_space<vmem>>, vector<8x128xf32>
    %c0_4 = arith.constant 0 : index
    %c0_5 = arith.constant 0 : index
    %5 = vector.load %arg3[%c0_4, %c0_5] : memref<256x128xf32, #tpu.memory_space<vmem>>, vector<256x128xf32>
    %cst = arith.constant dense<0.000000e+00> : vector<8x128xf32>
    %6 = tpu.matmul %3, %5, %cst {dimension_numbers = #tpu.dot_dimension_numbers<[1], [0], [0], [1], [0, 0, 1, 1], [], []>} : vector<8x256xf32>, vector<256x128xf32>, vector<8x128xf32> -> vector<8x128xf32>
    %7 = arith.addf %4, %6 : vector<8x128xf32>
    %c0_6 = arith.constant 0 : index
    %c0_7 = arith.constant 0 : index
    %8 = vector.load %arg6[%c0_6, %c0_7] : memref<8x128xf32, #tpu.memory_space<vmem>>, vector<8x128xf32>
    tpu.vector_store %arg6[%c0_6, %c0_7], %7 {strides = array<i32>} : memref<8x128xf32, #tpu.memory_space<vmem>>, vector<8x128xf32>,
    %c0_i32_8 = arith.constant 0 : i32
    %9 = arith.cmpi eq, %arg1, %c0_i32_8 : i32
    %10 = arith.extui %9 : i1 to i32
    %c0_i32_9 = arith.constant 0 : i32
    %11 = arith.cmpi ne, %10, %c0_i32_9 : i32
    scf.if %11 {
      %c0_10 = arith.constant 0 : index
      %c0_11 = arith.constant 0 : index
      %12 = vector.load %arg6[%c0_10, %c0_11] : memref<8x128xf32, #tpu.memory_space<vmem>>, vector<8x128xf32>
      %c0_12 = arith.constant 0 : index
      %c0_13 = arith.constant 0 : index
      %13 = vector.load %arg4[%c0_12, %c0_13] : memref<1x128xf32, #tpu.memory_space<vmem>>, vector<1x128xf32>
      %14 = vector.extract_strided_slice %12 {offsets = [0, 0], sizes = [8, 96], strides = [1, 1]} : vector<8x128xf32> to vector<8x96xf32>
      %15 = vector.extract_strided_slice %13 {offsets = [0, 0], sizes = [1, 96], strides = [1, 1]} : vector<1x128xf32> to vector<1x96xf32>
      %16 = vector.broadcast %15 : vector<1x96xf32> to vector<8x96xf32>
      %17 = arith.addf %14, %16 : vector<8x96xf32>
      %c0_14 = arith.constant 0 : index
      %c0_15 = arith.constant 0 : index
      %18 = vector.load %arg5[%c0_14, %c0_15] : memref<8x96xf32, #tpu.memory_space<vmem>>, vector<8x96xf32>
      tpu.vector_store %arg5[%c0_14, %c0_15], %17 {strides = array<i32>} : memref<8x96xf32, #tpu.memory_space<vmem>>, vector<8x96xf32>,
    } else {
    }
    return
  }
  func.func @transform_0(%arg0: i32, %arg1: i32) -> (i32, i32) {
    %c0_i32 = arith.constant 0 : i32
    return %arg0, %arg1 : i32, i32
  }
  func.func @transform_1(%arg0: i32, %arg1: i32) -> (i32, i32) {
    %c0_i32 = arith.constant 0 : i32
    %c0_i32_0 = arith.constant 0 : i32
    return %arg1, %c0_i32 : i32, i32
  }
  func.func @transform_2(%arg0: i32, %arg1: i32) -> (i32, i32) {
    %c0_i32 = arith.constant 0 : i32
    %c0_i32_0 = arith.constant 0 : i32
    %c0_i32_1 = arith.constant 0 : i32
    return %c0_i32, %c0_i32_0 : i32, i32
  }
  func.func @transform_3(%arg0: i32, %arg1: i32) -> (i32, i32) {
    %c0_i32 = arith.constant 0 : i32
    %c0_i32_0 = arith.constant 0 : i32
    return %arg0, %c0_i32 : i32, i32
  }
}

</mosaic_0001>

<llo_original>
// kernel: tpu_custom_call.1
$region0: #{tpu_custom_call.1}
  #allocation0 [shape = 'u32[]', space=smem, size = 0x4, offset = 0x4, fixed_abs, tag = 'smem constant byte address 0x4 - core index']
  #allocation1 [shape = 'u32[144,128]{1,0:T(1,128)}', space=vmem, size = 0x12000, scoped, tag = 'internal scratch']
  #allocation2 [shape = 'f32[8,128]{1,0:T(8,128)}', space=vmem, size = 0x1000, scoped, tag = 'scratch operand']
  %s0 = inlined_call_operand.hbm [shape: f32[8,256], index: 0, kind: input, shape index: {}]
  %s1 = inlined_call_operand.hbm [shape: f32[256,128], index: 1, kind: input, shape index: {}]
  %s2 = inlined_call_operand.vmem [shape: f32[1,128], index: 2, kind: input, shape index: {}]
  %s3 = inlined_call_operand.hbm [shape: f32[8,96], index: 3, kind: output, shape index: {}]
  %s4 = sld [smem:[#allocation0]]
  $region38: #{tpu_custom_call.1} parent=0
    _
  %s6 = ssub.s32 1, %s4
  %s7 = scalar_select 0, %s6, %s4
  $region1: #{tpu_custom_call.1} parent=0
    #allocation3 [shape = 'u8[8192]{0}', space=vmem, size = 0x2000, scoped, tag = 'input window, operand 0, single buffered']
    #allocation4 [shape = 's32[1]{0}', space=sflag, size = 0x4, scoped, tag = 'scoped memory for tpu_custom_call.1']
    #allocation5 [shape = 's32[1]{0}', space=sflag, size = 0x4, scoped, tag = 'scoped memory for tpu_custom_call.1']
    #allocation6 [shape = 'u8[131072]{0}', space=vmem, size = 0x20000, scoped, tag = 'input window, operand 1, single buffered']
    #allocation7 [shape = 's32[1]{0}', space=sflag, size = 0x4, scoped, tag = 'scoped memory for tpu_custom_call.1']
    #allocation8 [shape = 'u8[4096]{0}', space=vmem, size = 0x1000, scoped, tag = 'output window, operand 0, single buffered']
    %8 = vsyncpa [#allocation4], 0
    %9 = vsyncpa [#allocation7], 0
    %10 = vsyncpa [#allocation5], 0
    // Predicated region
    $region2: #{tpu_custom_call.1} parent=1 // pred_check
      _
    $region3: #{tpu_custom_call.1} parent=1 // pred_check_branch
      %12 = sbr.rel (0) target = $region5
    $region4: #{tpu_custom_call.1} parent=1 // pred_region
      %s14 = ssub.s32 256, 256
      %15 = vsyncadd [#allocation4], %s14
      %s17 = sshll.u32 [#allocation3], 4
      %s18 = int_to_ptr.vmem [resolvable:$true] %s17
      %20 = dma.hbm_to_vmem [thread:$0]  %s0, 256, %s18, [#allocation4]
    $region5: #{tpu_custom_call.1} parent=1 // pred_fallthru
      _
    // Predicated region
    $region6: #{tpu_custom_call.1} parent=1 // pred_check
      _
    $region7: #{tpu_custom_call.1} parent=1 // pred_check_branch
      %22 = sbr.rel (0) target = $region9
    $region8: #{tpu_custom_call.1} parent=1 // pred_region
      %s24 = ssub.s32 4096, 4096
      %25 = vsyncadd [#allocation7], %s24
      %s26 = sshll.u32 [#allocation6], 4
      %s27 = int_to_ptr.vmem [resolvable:$true] %s26
      %32 = dma.hbm_to_vmem [thread:$0]  %s1, 4096, %s27, [#allocation7], 128, 128, 8
    $region9: #{tpu_custom_call.1} parent=1 // pred_fallthru
      _
    // Predicated region
    $region10: #{tpu_custom_call.1} parent=1 // pred_check
      _
    $region11: #{tpu_custom_call.1} parent=1 // pred_check_branch
      %34 = sbr.rel (0) target = $region13
    $region12: #{tpu_custom_call.1} parent=1 // pred_region
      _
    $region13: #{tpu_custom_call.1} parent=1 // pred_fallthru
      _
    // Predicated region
    $region14: #{tpu_custom_call.1} parent=1 // pred_check
      _
    $region15: #{tpu_custom_call.1} parent=1 // pred_check_branch
      %36 = sbr.rel (0) target = $region17
    $region16: #{tpu_custom_call.1} parent=1 // pred_region
      %37 = dma.done [#allocation4], 256
    $region17: #{tpu_custom_call.1} parent=1 // pred_fallthru
      _
    // Predicated region
    $region18: #{tpu_custom_call.1} parent=1 // pred_check
      _
    $region19: #{tpu_custom_call.1} parent=1 // pred_check_branch
      %39 = sbr.rel (0) target = $region21
    $region20: #{tpu_custom_call.1} parent=1 // pred_region
      %40 = dma.done [#allocation7], 4096
    $region21: #{tpu_custom_call.1} parent=1 // pred_fallthru
      _
    %p41 = scmp.eq.s32.totalorder 0, 0
    // Predicated region
    $region22: #{tpu_custom_call.1} parent=1 // pred_check
      %p42 = pneg %p41
    $region23: #{tpu_custom_call.1} parent=1 // pred_check_branch
      %44 = sbr.rel (%p42) target = $region25
    $region24: #{tpu_custom_call.1} parent=1 // pred_region
      %45 = vst [vmem:[#allocation2] sm:$0xff] 0.0
    $region25: #{tpu_custom_call.1} parent=1 // pred_fallthru
      _
    %v46 = vld [vmem:[#allocation3] sm:$0xff]
    %v47 = vld [vmem:[#allocation3 + $0x8] sm:$0xff]
    %v48 = vld [vmem:[#allocation2] sm:$0xff]
    %v49 = vld [vmem:[#allocation6] sm:$0xff]
    %v50 = vld [vmem:[#allocation6 + $0x8] sm:$0xff]
    %v51 = vld [vmem:[#allocation6 + $0x10] sm:$0xff]
    %v52 = vld [vmem:[#allocation6 + $0x18] sm:$0xff]
    %v53 = vld [vmem:[#allocation6 + $0x20] sm:$0xff]
    %v54 = vld [vmem:[#allocation6 + $0x28] sm:$0xff]
    %v55 = vld [vmem:[#allocation6 + $0x30] sm:$0xff]
    %v56 = vld [vmem:[#allocation6 + $0x38] sm:$0xff]
    %v57 = vld [vmem:[#allocation6 + $0x40] sm:$0xff]
    %v58 = vld [vmem:[#allocation6 + $0x48] sm:$0xff]
    %v59 = vld [vmem:[#allocation6 + $0x50] sm:$0xff]
    %v60 = vld [vmem:[#allocation6 + $0x58] sm:$0xff]
    %v61 = vld [vmem:[#allocation6 + $0x60] sm:$0xff]
    %v62 = vld [vmem:[#allocation6 + $0x68] sm:$0xff]
    %v63 = vld [vmem:[#allocation6 + $0x70] sm:$0xff]
    %v64 = vld [vmem:[#allocation6 + $0x78] sm:$0xff]
    %v65 = vld [vmem:[#allocation6 + $0x80] sm:$0xff]
    %v66 = vld [vmem:[#allocation6 + $0x88] sm:$0xff]
    %v67 = vld [vmem:[#allocation6 + $0x90] sm:$0xff]
    %v68 = vld [vmem:[#allocation6 + $0x98] sm:$0xff]
    %v69 = vld [vmem:[#allocation6 + $0xa0] sm:$0xff]
    %v70 = vld [vmem:[#allocation6 + $0xa8] sm:$0xff]
    %v71 = vld [vmem:[#allocation6 + $0xb0] sm:$0xff]
    %v72 = vld [vmem:[#allocation6 + $0xb8] sm:$0xff]
    %v73 = vld [vmem:[#allocation6 + $0xc0] sm:$0xff]
    %v74 = vld [vmem:[#allocation6 + $0xc8] sm:$0xff]
    %v75 = vld [vmem:[#allocation6 + $0xd0] sm:$0xff]
    %v76 = vld [vmem:[#allocation6 + $0xd8] sm:$0xff]
    %v77 = vld [vmem:[#allocation6 + $0xe0] sm:$0xff]
    %v78 = vld [vmem:[#allocation6 + $0xe8] sm:$0xff]
    %v79 = vld [vmem:[#allocation6 + $0xf0] sm:$0xff]
    %v80 = vld [vmem:[#allocation6 + $0xf8] sm:$0xff]
    %81 = vmatprep.subr.mxu0 0.0
    %82 = vmatpush1.msra.mxu0 %v64
    %83 = vmatprep.subr.mxu0 0.0
    %84 = vmatpush1.msra.mxu0 %v63
    %85 = vmatprep.subr.mxu0 0.0
    %86 = vmatpush1.msra.mxu0 %v62
    %87 = vmatprep.subr.mxu0 0.0
    %88 = vmatpush1.msra.mxu0 %v61
    %89 = vmatprep.subr.mxu0 0.0
    %90 = vmatpush1.msra.mxu0 %v60
    %91 = vmatprep.subr.mxu0 0.0
    %92 = vmatpush1.msra.mxu0 %v59
    %93 = vmatprep.subr.mxu0 0.0
    %94 = vmatpush1.msra.mxu0 %v58
    %95 = vmatprep.subr.mxu0 0.0
    %96 = vmatpush1.msra.mxu0 %v57
    %97 = vmatprep.subr.mxu0 0.0
    %98 = vmatpush1.msra.mxu0 %v56
    %99 = vmatprep.subr.mxu0 0.0
    %100 = vmatpush1.msra.mxu0 %v55
    %101 = vmatprep.subr.mxu0 0.0
    %102 = vmatpush1.msra.mxu0 %v54
    %103 = vmatprep.subr.mxu0 0.0
    %104 = vmatpush1.msra.mxu0 %v53
    %105 = vmatprep.subr.mxu0 0.0
    %106 = vmatpush1.msra.mxu0 %v52
    %107 = vmatprep.subr.mxu0 0.0
    %108 = vmatpush1.msra.mxu0 %v51
    %109 = vmatprep.subr.mxu0 0.0
    %110 = vmatpush1.msra.mxu0 %v50
    %111 = vmatprep.subr.mxu0 0.0
    %112 = vmatpush1.msra.mxu0 %v49
    %113 = vmatprep.subr.mxu0 0.0
    %114 = vmatpush2.msra.mxu0 %v80
    %115 = vmatprep.subr.mxu0 0.0
    %116 = vmatpush2.msra.mxu0 %v79
    %117 = vmatprep.subr.mxu0 0.0
    %118 = vmatpush2.msra.mxu0 %v78
    %119 = vmatprep.subr.mxu0 0.0
    %120 = vmatpush2.msra.mxu0 %v77
    %121 = vmatprep.subr.mxu0 0.0
    %122 = vmatpush2.msra.mxu0 %v76
    %123 = vmatprep.subr.mxu0 0.0
    %124 = vmatpush2.msra.mxu0 %v75
    %125 = vmatprep.subr.mxu0 0.0
    %126 = vmatpush2.msra.mxu0 %v74
    %127 = vmatprep.subr.mxu0 0.0
    %128 = vmatpush2.msra.mxu0 %v73
    %129 = vmatprep.subr.mxu0 0.0
    %130 = vmatpush2.msra.mxu0 %v72
    %131 = vmatprep.subr.mxu0 0.0
    %132 = vmatpush2.msra.mxu0 %v71
    %133 = vmatprep.subr.mxu0 0.0
    %134 = vmatpush2.msra.mxu0 %v70
    %135 = vmatprep.subr.mxu0 0.0
    %136 = vmatpush2.msra.mxu0 %v69
    %137 = vmatprep.subr.mxu0 0.0
    %138 = vmatpush2.msra.mxu0 %v68
    %139 = vmatprep.subr.mxu0 0.0
    %140 = vmatpush2.msra.mxu0 %v67
    %141 = vmatprep.subr.mxu0 0.0
    %142 = vmatpush2.msra.mxu0 %v66
    %143 = vmatprep.subr.mxu0 0.0
    %144 = vmatpush2.msra.mxu0 %v65
    %145 = vmatprep.mubr.f32.mxu0 %v47
    %146 = vmatmul.mubr.f32.gmra.mxu0 %v46
    %v147 = vpop.f32.mrf.mxu0
    %v148 = vadd.f32 0.0, %v147
    %v149 = vpop.f32.mrf.mxu0
    %150 = vdwg.mxu0
    %v151 = vadd.f32 %v48, %v148
    %152 = vst [vmem:[#allocation2] sm:$0xff] %v151
    // Predicated region
    $region26: #{tpu_custom_call.1} parent=1 // pred_check
      %p153 = pneg %p41
    $region27: #{tpu_custom_call.1} parent=1 // pred_check_branch
      %155 = sbr.rel (%p153) target = $region29
    $region28: #{tpu_custom_call.1} parent=1 // pred_region
      %v156 = vld [vmem:[#allocation2] sm:$0xff]
      %v157 = vld [vmem:[%s2] sm:$0x1]
      %v159 = vlaneseq
      %v160 = vshrl.u32 %v159, 7
      %v161 = vsub.s32 0, %v160
      %v162 = vrot.slane %v157, %v161
      %v164 = vadd.f32 %v156, %v162
      %vm165 = vcmask 785408
      %166 = vst.msk [vmem:[#allocation8] sm:$0xff] %vm165, %v164
    $region29: #{tpu_custom_call.1} parent=1 // pred_fallthru
      _
    // Predicated region
    $region30: #{tpu_custom_call.1} parent=1 // pred_check
      _
    $region31: #{tpu_custom_call.1} parent=1 // pred_check_branch
      %168 = sbr.rel (0) target = $region33
    $region32: #{tpu_custom_call.1} parent=1 // pred_region
      %s170 = ssub.s32 128, 128
      %171 = vsyncadd [#allocation5], %s170
      %s173 = sshll.u32 [#allocation8], 4
      %s174 = int_to_ptr.vmem [resolvable:$true] %s173
      %176 = dma.vmem_to_hbm [thread:$0]  %s174, 128, %s3, [#allocation5]
    $region33: #{tpu_custom_call.1} parent=1 // pred_fallthru
      _
    // Predicated region
    $region34: #{tpu_custom_call.1} parent=1 // pred_check
      _
    $region35: #{tpu_custom_call.1} parent=1 // pred_check_branch
      %178 = sbr.rel (0) target = $region37
    $region36: #{tpu_custom_call.1} parent=1 // pred_region
      %179 = dma.done [#allocation5], 128
    $region37: #{tpu_custom_call.1} parent=1 // pred_fallthru
      _
    %180 = vsyncpa [#allocation4], 1
    %181 = vsyncpa [#allocation7], 1
    %182 = vsyncpa [#allocation5], 1

</llo_original>
